<compile_context>
chip_gen: v6e
topology: v6e:2x2x1
jax: 0.10.0
libtpu: 0.0.40
codegen_flags: <defaults>
</compile_context>

<pallas_src>
import jax
import jax.numpy as jnp
from jax.experimental import pallas as pl
from jax.experimental.pallas import tpu as pltpu

BN_EPS = 1e-5


def _round_up(x, m):
    return ((x + m - 1) // m) * m


def _cdiv(a, b):
    return (a + b - 1) // b


def _device_kind():
    try:
        return jax.devices()[0].device_kind.lower()
    except Exception:
        return ""


def _lane_align(dim):
    # v6e / v7x have 256-wide MXUs: pad K / OC to 256 when they are already
    # >= 256 so the systolic array is fully fed; 128 otherwise / on v5e.
    kind = _device_kind()
    if dim >= 256 and ("v6" in kind or "v7" in kind):
        return 256
    return 128


def _vmem_limit(nbytes):
    # v7x has 64 MiB physical VMEM per TensorCore; v5e / v6e have 128 MiB.
    cap = (48 << 20) if "v7" in _device_kind() else (96 << 20)
    return int(min(max(2 * nbytes, 8 << 20), cap))


# ---------------------------------------------------------------------------
# Pass 1: conv matmul (bf16 operands, f32 VMEM accumulator) with a K grid
# axis, plus per-channel sum / sum-of-squares accumulated across the M tiles
# of each shard (resident output block, "arbitrary" axes).
# ---------------------------------------------------------------------------
def _conv_stats_kernel(p_ref, w_ref, conv_ref, stats_ref, acc_ref):
    i = pl.program_id(1)          # M tile within this shard
    k = pl.program_id(2)          # K tile
    nk = pl.num_programs(2)

    @pl.when(jnp.logical_and(i == 0, k == 0))
    def _():
        stats_ref[...] = jnp.zeros_like(stats_ref)

    @pl.when(k == 0)
    def _():
        acc_ref[...] = jnp.zeros_like(acc_ref)

    acc_ref[...] += jnp.dot(p_ref[...], w_ref[...],
                            preferred_element_type=jnp.float32)

    @pl.when(k == nk - 1)
    def _():
        acc = acc_ref[...]
        # bf16 intermediate halves the HBM bytes of the streaming BN pass.
        conv_ref[...] = acc.astype(conv_ref.dtype)
        # Row 0: per-channel sum, row 1: sum of squares — one 2-row store.
        sums = jnp.concatenate(
            [jnp.sum(acc, axis=0, keepdims=True),
             jnp.sum(acc * acc, axis=0, keepdims=True)], axis=0)
        stats_ref[0:2, :] += sums


# ---------------------------------------------------------------------------
# Pass 2: streaming BN-apply + ReLU  (bf16 in, f32 FMA, max with 0).
# ---------------------------------------------------------------------------
def _bn_relu_kernel(conv_ref, scale_ref, shift_ref, out_ref):
    y = conv_ref[...].astype(jnp.float32) * scale_ref[...] + shift_ref[...]
    out_ref[...] = jnp.maximum(y, 0.0).astype(out_ref.dtype)


def _im2col(x, kh, kw, stride, padding):
    """x: [N, C, H, W] -> patches [N*OH*OW, C*KH*KW], ordering (c, ki, kj)."""
    n, c, h, w = x.shape
    xp = jnp.pad(x, ((0, 0), (0, 0), (padding, padding), (padding, padding)))
    oh = (h + 2 * padding - kh) // stride + 1
    ow = (w + 2 * padding - kw) // stride + 1
    cols = []
    for i in range(kh):
        for j in range(kw):
            cols.append(xp[:, :, i:i + stride * oh:stride, j:j + stride * ow:stride])
    p = jnp.stack(cols, axis=2)                      # [N, C, KH*KW, OH, OW]
    p = p.reshape(n, c * kh * kw, oh, ow)            # (c, ki, kj) ordering
    p = p.transpose(0, 2, 3, 1).reshape(n * oh * ow, c * kh * kw)
    return p, oh, ow


def conv_bn_relu(x, weight, bias, gamma, beta, *, stride=1, padding=0,
                 tm=512, tk_max=1024, tm2_max=2048, n_shards=2):
    """x: [N, C, H, W] (NCHW); weight: [OC, C, KH, KW] (PyTorch layout).

    `tm` is the pass-1 M tile, `tk_max` caps the K tile (adds a K grid axis
    when C*KH*KW is large), `n_shards` is the leading parallel axis (2 uses
    both TensorCores on v7x; harmless on single-TC chips).
    `bias` is accepted for API parity but not added: training-mode BN mean
    subtraction cancels a conv bias exactly.
    """
    del bias  # mathematically absorbed by BN's mean subtraction
    n, c, h, w = x.shape
    oc, _, kh, kw = weight.shape

    # TODO(synk): host-side im2col still materializes the KH*KW patch
    # expansion; allow_input_fusion below lets the pad/cast fuse into the
    # pass-1 input DMA as an interim mitigation.
    patches, oh, ow = _im2col(x, kh, kw, stride, padding)
    m, kdim = patches.shape

    oc_p = _round_up(oc, _lane_align(oc))
    k_p = _round_up(kdim, _lane_align(kdim))
    tk = min(tk_max, k_p)
    k_p = _round_up(k_p, tk)
    k_tiles = k_p // tk

    tm = min(tm, _round_up(m, 8))
    n_tiles = _cdiv(m, tm)
    n_shards = max(1, min(n_shards, n_tiles))
    tiles_per_shard = _cdiv(n_tiles, n_shards)
    m_p = n_shards * tiles_per_shard * tm

    # Lane-dense, zero-padded operands; bf16 feeds the MXU.
    patches_p = jnp.pad(patches.astype(jnp.bfloat16),
                        ((0, m_p - m), (0, k_p - kdim)))
    w_p = jnp.pad(weight.reshape(oc, kdim).T.astype(jnp.bfloat16),
                  ((0, k_p - kdim), (0, oc_p - oc)))

    # ---------------- pass 1: conv + batch statistics ----------------
    vmem1 = (2 * tm * tk * 2          # patches double buffer (bf16)
             + 2 * tk * oc_p * 2      # weight double buffer (bf16)
             + 2 * tm * oc_p * 2      # conv-out double buffer (bf16)
             + 2 * 8 * oc_p * 4       # stats double buffer (f32)
             + tm * oc_p * 4)         # f32 accumulator scratch

    conv_out, stats = pl.pallas_call(
        _conv_stats_kernel,
        out_shape=(
            jax.ShapeDtypeStruct((m_p, oc_p), jnp.bfloat16),
            jax.ShapeDtypeStruct((n_shards * 8, oc_p), jnp.float32),
        ),
        grid=(n_shards, tiles_per_shard, k_tiles),
        in_specs=[
            pl.BlockSpec((tm, tk),
                         lambda s, i, k: (s * tiles_per_shard + i, k)),
            pl.BlockSpec((tk, oc_p), lambda s, i, k: (k, 0)),
        ],
        out_specs=(
            pl.BlockSpec((tm, oc_p),
                         lambda s, i, k: (s * tiles_per_shard + i, 0)),
            pl.BlockSpec((8, oc_p), lambda s, i, k: (s, 0)),
        ),
        scratch_shapes=[pltpu.VMEM((tm, oc_p), jnp.float32)],
        compiler_params=pltpu.CompilerParams(
            dimension_semantics=("parallel", "arbitrary", "arbitrary"),
            allow_input_fusion=[True, True],
            vmem_limit_bytes=_vmem_limit(vmem1)),
        cost_estimate=pl.CostEstimate(
            flops=2 * m_p * k_p * oc_p,
            transcendentals=0,
            bytes_accessed=(m_p * k_p * 2 + k_p * oc_p * 2
                            + m_p * oc_p * 2 + n_shards * 8 * oc_p * 4)),
    )(patches_p, w_p)

    # -------- fold BN parameters (tiny [OC] vector math, per-shard combine) ----
    # TODO(synk): E[x^2]-E[x]^2 in f32 can cancel badly for very large M;
    # switch to per-tile centered / Welford merging for production shapes.
    stats = stats.reshape(n_shards, 8, oc_p).sum(axis=0)
    m_f = jnp.float32(m)                       # true row count (pad rows are 0)
    mean = stats[0, :] / m_f
    var = jnp.maximum(stats[1, :] / m_f - mean * mean, 0.0)   # biased variance
    inv_std = jax.lax.rsqrt(var + BN_EPS)
    # Padded OC lanes have var=0 -> huge inv_std, masked by gamma_pad=0;
    # keep gamma zero-padded (not ones) or these lanes leak garbage.
    gamma_p = jnp.pad(gamma.astype(jnp.float32), (0, oc_p - oc))
    beta_p = jnp.pad(beta.astype(jnp.float32), (0, oc_p - oc))
    scale = (gamma_p * inv_std).reshape(1, oc_p)
    shift = (beta_p - mean * gamma_p * inv_std).reshape(1, oc_p)

    # ---------------- pass 2: BN apply + ReLU (own, larger tile) ----------------
    total_tiles = m_p // tm
    fac = 1
    for cand in range(total_tiles, 0, -1):
        if total_tiles % cand == 0 and cand * tm <= tm2_max:
            fac = cand
            break
    tm2 = tm * fac
    n_tiles2 = m_p // tm2

    vmem2 = 2 * tm2 * oc_p * 2 + 2 * tm2 * oc_p * 4 + 2 * 2 * oc_p * 4
    out_flat = pl.pallas_call(
        _bn_relu_kernel,
        out_shape=jax.ShapeDtypeStruct((m_p, oc_p), jnp.float32),
        grid=(n_tiles2,),
        in_specs=[
            pl.BlockSpec((tm2, oc_p), lambda i: (i, 0)),
            pl.BlockSpec((1, oc_p), lambda i: (0, 0)),
            pl.BlockSpec((1, oc_p), lambda i: (0, 0)),
        ],
        out_specs=pl.BlockSpec((tm2, oc_p), lambda i: (i, 0)),
        compiler_params=pltpu.CompilerParams(
            dimension_semantics=("parallel",),
            vmem_limit_bytes=_vmem_limit(vmem2)),
        cost_estimate=pl.CostEstimate(
            flops=3 * m_p * oc_p,
            transcendentals=0,
            bytes_accessed=m_p * oc_p * 2 + m_p * oc_p * 4 + 2 * oc_p * 4),
    )(conv_out, scale, shift)

    # TODO(synk): keep [M, OC] / NHWC end-to-end for a fused consumer; the
    # slice + transpose below is an extra HBM round trip kept only to match
    # the module's NCHW output contract.
    out = out_flat[:m, :oc].reshape(n, oh, ow, oc).transpose(0, 3, 1, 2)
    return out


def _reference(x, weight, bias, gamma, beta, *, stride, padding):
    """Plain-JAX reference with the same bf16-operand conv (f32 accumulation)."""
    y = jax.lax.conv_general_dilated(
        x.astype(jnp.bfloat16), weight.astype(jnp.bfloat16),
        window_strides=(stride, stride),
        padding=[(padding, padding), (padding, padding)],
        dimension_numbers=("NCHW", "OIHW", "NCHW"),
        preferred_element_type=jnp.float32)
    y = y + bias.reshape(1, -1, 1, 1).astype(jnp.float32)
    mean = jnp.mean(y, axis=(0, 2, 3), keepdims=True)
    var = jnp.mean((y - mean) ** 2, axis=(0, 2, 3), keepdims=True)
    y = (y - mean) * jax.lax.rsqrt(var + BN_EPS)
    y = y * gamma.reshape(1, -1, 1, 1) + beta.reshape(1, -1, 1, 1)
    return jnp.maximum(y, 0.0)


if __name__ == "__main__":
    # Small shapes consistent with the module: in_channels=4, out_channels=8,
    # kernel_size=3, stride=1, padding=1, input [2, 4, 16, 16].
    N, C, H, W = 2, 4, 16, 16
    OC, K, STRIDE, PAD = 8, 3, 1, 1

    key = jax.random.PRNGKey(0)
    kx, kw, kb, kg, kbe = jax.random.split(key, 5)

    x = jax.random.normal(kx, (N, C, H, W), dtype=jnp.float32)
    weight = 0.1 * jax.random.normal(kw, (OC, C, K, K), dtype=jnp.float32)
    bias = 0.1 * jax.random.normal(kb, (OC,), dtype=jnp.float32)
    gamma = 1.0 + 0.1 * jax.random.normal(kg, (OC,), dtype=jnp.float32)
    beta = 0.1 * jax.random.normal(kbe, (OC,), dtype=jnp.float32)

    # tm=128 with M = 2*16*16 = 512 gives 2 shards x 2 M-tiles, exercising the
    # sharded cross-tile statistics accumulation and host-side shard combine.
    out = conv_bn_relu(x, weight, bias, gamma, beta,
                       stride=STRIDE, padding=PAD, tm=128, n_shards=2)
    out = jax.block_until_ready(out)

    ref = _reference(x, weight, bias, gamma, beta, stride=STRIDE, padding=PAD)
    assert out.shape == (N, OC, H, W), out.shape
    # bf16 MXU operands + bf16 conv intermediate -> relaxed tolerance vs the
    # bf16-operand / f32-intermediate reference.
    assert jnp.allclose(out, ref, atol=2e-2, rtol=2e-2), "mismatch vs reference"

    print("KERNEL_OK")
</pallas_src>

<mosaic_0001>
module attributes {stable_mosaic.version = 11 : i64} {
  func.func @_conv_stats_kernel(%arg0: i32, %arg1: i32, %arg2: i32, %arg3: memref<128x128xbf16, #tpu.memory_space<vmem>>, %arg4: memref<128x128xbf16, #tpu.memory_space<vmem>>, %arg5: memref<128x128xbf16, #tpu.memory_space<vmem>>, %arg6: memref<8x128xf32, #tpu.memory_space<vmem>>, %arg7: memref<128x128xf32, #tpu.memory_space<vmem>>) attributes {dimension_semantics = [#tpu.dimension_semantics<parallel>, #tpu.dimension_semantics<arbitrary>, #tpu.dimension_semantics<arbitrary>], iteration_bounds = array<i64: 2, 2, 1>, scalar_prefetch = 0 : i64, scratch_operands = 1 : i64, tpu.core_type = #tpu.core_type<tc>, window_params = [{transform_indices = @transform_0, window_bounds = array<i64: 128, 128>}, {transform_indices = @transform_1, window_bounds = array<i64: 128, 128>}, {transform_indices = @transform_2, window_bounds = array<i64: 128, 128>}, {transform_indices = @transform_3, window_bounds = array<i64: 8, 128>}]} {
    %c0_i32 = arith.constant 0 : i32
    %0 = arith.cmpi eq, %arg1, %c0_i32 : i32
    %c0_i32_0 = arith.constant 0 : i32
    %1 = arith.cmpi eq, %arg2, %c0_i32_0 : i32
    %2 = arith.andi %0, %1 : i1
    %3 = arith.extui %2 : i1 to i32
    %c0_i32_1 = arith.constant 0 : i32
    %4 = arith.cmpi ne, %3, %c0_i32_1 : i32
    scf.if %4 {
      %cst_13 = arith.constant 0.000000e+00 : f32
      %17 = vector.broadcast %cst_13 : f32 to vector<8x128xf32>
      %c0_14 = arith.constant 0 : index
      %c0_15 = arith.constant 0 : index
      %18 = vector.load %arg6[%c0_14, %c0_15] : memref<8x128xf32, #tpu.memory_space<vmem>>, vector<8x128xf32>
      tpu.vector_store %arg6[%c0_14, %c0_15], %17 {strides = array<i32>} : memref<8x128xf32, #tpu.memory_space<vmem>>, vector<8x128xf32>,
    } else {
    }
    %c0_i32_2 = arith.constant 0 : i32
    %5 = arith.cmpi eq, %arg2, %c0_i32_2 : i32
    %6 = arith.extui %5 : i1 to i32
    %c0_i32_3 = arith.constant 0 : i32
    %7 = arith.cmpi ne, %6, %c0_i32_3 : i32
    scf.if %7 {
      %cst_13 = arith.constant 0.000000e+00 : f32
      %17 = vector.broadcast %cst_13 : f32 to vector<128x128xf32>
      %c0_14 = arith.constant 0 : index
      %c0_15 = arith.constant 0 : index
      %18 = vector.load %arg7[%c0_14, %c0_15] : memref<128x128xf32, #tpu.memory_space<vmem>>, vector<128x128xf32>
      tpu.vector_store %arg7[%c0_14, %c0_15], %17 {strides = array<i32>} : memref<128x128xf32, #tpu.memory_space<vmem>>, vector<128x128xf32>,
    } else {
    }
    %c0 = arith.constant 0 : index
    %c0_4 = arith.constant 0 : index
    %8 = vector.load %arg7[%c0, %c0_4] : memref<128x128xf32, #tpu.memory_space<vmem>>, vector<128x128xf32>
    %c0_5 = arith.constant 0 : index
    %c0_6 = arith.constant 0 : index
    %9 = vector.load %arg3[%c0_5, %c0_6] : memref<128x128xbf16, #tpu.memory_space<vmem>>, vector<128x128xbf16>
    %c0_7 = arith.constant 0 : index
    %c0_8 = arith.constant 0 : index
    %10 = vector.load %arg4[%c0_7, %c0_8] : memref<128x128xbf16, #tpu.memory_space<vmem>>, vector<128x128xbf16>
    %cst = arith.constant dense<0.000000e+00> : vector<128x128xf32>
    %11 = tpu.matmul %9, %10, %cst {dimension_numbers = #tpu.dot_dimension_numbers<[1], [0], [0], [1], [0, 0, 1, 1], [], []>} : vector<128x128xbf16>, vector<128x128xbf16>, vector<128x128xf32> -> vector<128x128xf32>
    %12 = arith.addf %8, %11 : vector<128x128xf32>
    %c0_9 = arith.constant 0 : index
    %c0_10 = arith.constant 0 : index
    %13 = vector.load %arg7[%c0_9, %c0_10] : memref<128x128xf32, #tpu.memory_space<vmem>>, vector<128x128xf32>
    tpu.vector_store %arg7[%c0_9, %c0_10], %12 {strides = array<i32>} : memref<128x128xf32, #tpu.memory_space<vmem>>, vector<128x128xf32>,
    %c0_i32_11 = arith.constant 0 : i32
    %14 = arith.cmpi eq, %arg2, %c0_i32_11 : i32
    %15 = arith.extui %14 : i1 to i32
    %c0_i32_12 = arith.constant 0 : i32
    %16 = arith.cmpi ne, %15, %c0_i32_12 : i32
    scf.if %16 {
      %c0_13 = arith.constant 0 : index
      %c0_14 = arith.constant 0 : index
      %17 = vector.load %arg7[%c0_13, %c0_14] : memref<128x128xf32, #tpu.memory_space<vmem>>, vector<128x128xf32>
      %18 = arith.truncf %17 : vector<128x128xf32> to vector<128x128xbf16>
      %c0_15 = arith.constant 0 : index
      %c0_16 = arith.constant 0 : index
      %19 = vector.load %arg5[%c0_15, %c0_16] : memref<128x128xbf16, #tpu.memory_space<vmem>>, vector<128x128xbf16>
      tpu.vector_store %arg5[%c0_15, %c0_16], %18 {strides = array<i32>} : memref<128x128xbf16, #tpu.memory_space<vmem>>, vector<128x128xbf16>,
      %cst_17 = arith.constant dense<0.000000e+00> : vector<128xf32>
      %20 = vector.multi_reduction <add>, %17, %cst_17 [0] : vector<128x128xf32> to vector<128xf32>
      %21 = vector.shape_cast %20 : vector<128xf32> to vector<1x128xf32>
      %22 = arith.mulf %17, %17 : vector<128x128xf32>
      %cst_18 = arith.constant dense<0.000000e+00> : vector<128xf32>
      %23 = vector.multi_reduction <add>, %22, %cst_18 [0] : vector<128x128xf32> to vector<128xf32>
      %24 = vector.shape_cast %23 : vector<128xf32> to vector<1x128xf32>
      %25 = tpu.concatenate %21, %24 in 0 : vector<1x128xf32>, vector<1x128xf32> -> vector<2x128xf32>
      %c0_19 = arith.constant 0 : index
      %c0_20 = arith.constant 0 : index
      %26 = vector.load %arg6[%c0_19, %c0_20] : memref<8x128xf32, #tpu.memory_space<vmem>>, vector<2x128xf32>
      %27 = arith.addf %26, %25 : vector<2x128xf32>
      %c0_21 = arith.constant 0 : index
      %c0_22 = arith.constant 0 : index
      %28 = vector.load %arg6[%c0_21, %c0_22] : memref<8x128xf32, #tpu.memory_space<vmem>>, vector<2x128xf32>
      tpu.vector_store %arg6[%c0_21, %c0_22], %27 {strides = array<i32>} : memref<8x128xf32, #tpu.memory_space<vmem>>, vector<2x128xf32>,
    } else {
    }
    return
  }
  func.func @transform_0(%arg0: i32, %arg1: i32, %arg2: i32) -> (i32, i32) {
    %c2_i32 = arith.constant 2 : i32
    %0 = arith.muli %arg0, %c2_i32 : i32
    %1 = arith.addi %0, %arg1 : i32
    %c0_i32 = arith.constant 0 : i32
    return %1, %arg2 : i32, i32
  }
  func.func @transform_1(%arg0: i32, %arg1: i32, %arg2: i32) -> (i32, i32) {
    %c0_i32 = arith.constant 0 : i32
    %c0_i32_0 = arith.constant 0 : i32
    return %arg2, %c0_i32 : i32, i32
  }
  func.func @transform_2(%arg0: i32, %arg1: i32, %arg2: i32) -> (i32, i32) {
    %c2_i32 = arith.constant 2 : i32
    %0 = arith.muli %arg0, %c2_i32 : i32
    %1 = arith.addi %0, %arg1 : i32
    %c0_i32 = arith.constant 0 : i32
    %c0_i32_0 = arith.constant 0 : i32
    return %1, %c0_i32 : i32, i32
  }
  func.func @transform_3(%arg0: i32, %arg1: i32, %arg2: i32) -> (i32, i32) {
    %c0_i32 = arith.constant 0 : i32
    %c0_i32_0 = arith.constant 0 : i32
    return %arg0, %c0_i32 : i32, i32
  }
}

</mosaic_0001>

<llo_original>
// kernel: tpu_custom_call.1
$region0: #{tpu_custom_call.1}
  #allocation0 [shape = 'u32[]', space=smem, size = 0x4, offset = 0x4, fixed_abs, tag = 'smem constant byte address 0x4 - core index']
  #allocation1 [shape = 'u32[144,128]{1,0:T(1,128)}', space=vmem, size = 0x12000, scoped, tag = 'internal scratch']
  #allocation2 [shape = 'f32[128,128]{1,0:T(8,128)}', space=vmem, size = 0x10000, scoped, tag = 'scratch operand']
  %s0 = inlined_call_operand.hbm [shape: bf16[512,128], index: 0, kind: input, shape index: {}]
  %s1 = inlined_call_operand.hbm [shape: bf16[128,128], index: 1, kind: input, shape index: {}]
  %s2 = inlined_call_operand.hbm [shape: bf16[512,128], index: 2, kind: output, shape index: {0}]
  %s3 = inlined_call_operand.hbm [shape: f32[16,128], index: 3, kind: output, shape index: {1}]
  %4 = xla_tuple %s2, %s3
  %s5 = sld [smem:[#allocation0]]
  $region69: #{tpu_custom_call.1} parent=0
    _
  %s7 = ssub.s32 1, %s5
  %s8 = scalar_select 0, %s7, %s5
  $region1: #{tpu_custom_call.1} parent=0
    #allocation3 [shape = 'u8[65536]{0}', space=vmem, size = 0x10000, scoped, tag = 'input window, operand 0']
    #allocation4 [shape = 's32[2]{0}', space=sflag, size = 0x8, scoped, tag = 'scoped memory for tpu_custom_call.1']
    #allocation5 [shape = 's32[2]{0}', space=sflag, size = 0x8, scoped, tag = 'scoped memory for tpu_custom_call.1']
    #allocation6 [shape = 'u8[32768]{0}', space=vmem, size = 0x8000, scoped, tag = 'input window, operand 1, single buffered']
    #allocation7 [shape = 's32[1]{0}', space=sflag, size = 0x4, scoped, tag = 'scoped memory for tpu_custom_call.1']
    #allocation8 [shape = 'u8[65536]{0}', space=vmem, size = 0x10000, scoped, tag = 'output window, operand 0']
    #allocation9 [shape = 'u8[8192]{0}', space=vmem, size = 0x2000, scoped, tag = 'output window, operand 1']
    #allocation10 [shape = 's32[2]{0}', space=sflag, size = 0x8, scoped, tag = 'scoped memory for tpu_custom_call.1']
    %9 = vsyncpa [#allocation4], 0
    %s10 = scalar_lea.sflag [#allocation4], 1
    %11 = vsyncpa %s10, 0
    %12 = vsyncpa [#allocation7], 0
    %13 = vsyncpa [#allocation5], 0
    %s14 = scalar_lea.sflag [#allocation5], 1
    %15 = vsyncpa %s14, 0
    %16 = vsyncpa [#allocation10], 0
    %s17 = scalar_lea.sflag [#allocation10], 1
    %18 = vsyncpa %s17, 0
    loop: start=0, step=1, limit=6
    $region2: #{tpu_custom_call.1} parent=1 // loop_pre_header
      _
    $region3: #{tpu_custom_call.1} parent=1 // loop_header
      %s20 = sphi 0, %s24
      %p21 = scmp.ge.s32.totalorder %s20, 6
      %s27 = sphi 0, %s46
      %s28 = sphi 0, %s42
      %s29 = sphi 0, %s38
      %s30 = sphi 0, %s27
      %s31 = sphi 0, %s28
      %s32 = sphi 0, %s29
      %s33 = sphi 0, %s30
      %s34 = sphi 0, %s31
      %s35 = sphi 0, %s32
      %s55 = sphi 0, %s57
      %s58 = sphi 0, %s55
      %s59 = sphi 0, %s58
      %s75 = sphi 0, %s59
      %s81 = sphi 0, %s83
      %s84 = sphi 0, %s81
      %s85 = sphi 0, %s84
      %s101 = sphi 0, %s85
      %s111 = sphi 0, %s113
      %s114 = sphi 0, %s111
      %s115 = sphi 0, %s114
      %s131 = sphi 0, %s115
      %s137 = sphi 0, %s139
      %s140 = sphi 0, %s137
      %s141 = sphi 0, %s140
      %s157 = sphi 0, %s141
    $region4: #{tpu_custom_call.1} parent=1 // loop_header_branch
      %23 = sbr.rel (%p21) target = $region8
    $region5: #{tpu_custom_call.1} parent=1 // loop_body
      %s25 = ssub.s32 %s20, 1
      %s26 = ssub.s32 %s20, 2
      %s36 = sadd.s32 1, %s29
      %p37 = scmp.ge.s32.totalorder %s36, 1
      %s38 = scalar_select %p37, 0, %s36
      %s39 = sadd.s32 1, %s28
      %s40 = scalar_select %p37, %s39, %s28
      %p41 = scmp.ge.s32.totalorder %s40, 2
      %s42 = scalar_select %p41, 0, %s40
      %s43 = sadd.s32 1, %s27
      %s44 = scalar_select %p41, %s43, %s27
      %p45 = scmp.ge.s32.totalorder %s44, 2
      %s46 = scalar_select %p45, 0, %s44
      %s47 = smul.u32 %s27, 2
      %s48 = sadd.s32 %s47, %s28
      %s49 = smul.u32 %s46, 2
      %s50 = sadd.s32 %s49, %s42
      %s51 = ssub.s32 %s48, %s50
      %s52 = ssub.s32 %s29, %s38
      %s53 = sor.u32 %s51, %s52
      %p54 = scmp.eq.s32.totalorder %s53, 0
      %s56 = sadd.s32 %s55, 1
      %s57 = scalar_select %p54, %s55, %s56
      %p60 = pneg %p54
      %p61 = scmp.eq.s32.totalorder %s20, 3
      %p62 = por %p60, %p61
      %p63 = scmp.ne.s32.totalorder %s55, %s58
      %p64 = scmp.eq.s32.totalorder %s20, 0
      %p65 = por %p63, %p64
      %p66 = scmp.ne.s32.totalorder %s55, %s58
      %p67 = scmp.eq.s32.totalorder %s25, 3
      %p68 = por %p66, %p67
      %p69 = scmp.ne.s32.totalorder %s58, %s59
      %p70 = scmp.eq.s32.totalorder %s25, 0
      %p71 = por %p69, %p70
      %p72 = scmp.ne.s32.totalorder %s58, %s59
      %p73 = scmp.eq.s32.totalorder %s26, 3
      %p74 = por %p72, %p73
      %p76 = scmp.ne.s32.totalorder %s59, %s75
      %p77 = scmp.eq.s32.totalorder %s26, 0
      %p78 = por %p76, %p77
      %s79 = ssub.s32 %s29, %s38
      %p80 = scmp.eq.s32.totalorder %s79, 0
      %s82 = sadd.s32 %s81, 1
      %s83 = scalar_select %p80, %s81, %s82
      %p86 = pneg %p80
      %p87 = scmp.eq.s32.totalorder %s20, 3
      %p88 = por %p86, %p87
      %p89 = scmp.ne.s32.totalorder %s81, %s84
      %p90 = scmp.eq.s32.totalorder %s20, 0
      %p91 = por %p89, %p90
      %p92 = scmp.ne.s32.totalorder %s81, %s84
      %p93 = scmp.eq.s32.totalorder %s25, 3
      %p94 = por %p92, %p93
      %p95 = scmp.ne.s32.totalorder %s84, %s85
      %p96 = scmp.eq.s32.totalorder %s25, 0
      %p97 = por %p95, %p96
      %p98 = scmp.ne.s32.totalorder %s84, %s85
      %p99 = scmp.eq.s32.totalorder %s26, 3
      %p100 = por %p98, %p99
      %p102 = scmp.ne.s32.totalorder %s85, %s101
      %p103 = scmp.eq.s32.totalorder %s26, 0
      %p104 = por %p102, %p103
      %s105 = smul.u32 %s27, 2
      %s106 = sadd.s32 %s105, %s28
      %s107 = smul.u32 %s46, 2
      %s108 = sadd.s32 %s107, %s42
      %s109 = ssub.s32 %s106, %s108
      %p110 = scmp.eq.s32.totalorder %s109, 0
      %s112 = sadd.s32 %s111, 1
      %s113 = scalar_select %p110, %s111, %s112
      %p116 = pneg %p110
      %p117 = scmp.eq.s32.totalorder %s20, 3
      %p118 = por %p116, %p117
      %p119 = scmp.ne.s32.totalorder %s111, %s114
      %p120 = scmp.eq.s32.totalorder %s20, 0
      %p121 = por %p119, %p120
      %p122 = scmp.ne.s32.totalorder %s111, %s114
      %p123 = scmp.eq.s32.totalorder %s25, 3
      %p124 = por %p122, %p123
      %p125 = scmp.ne.s32.totalorder %s114, %s115
      %p126 = scmp.eq.s32.totalorder %s25, 0
      %p127 = por %p125, %p126
      %p128 = scmp.ne.s32.totalorder %s114, %s115
      %p129 = scmp.eq.s32.totalorder %s26, 3
      %p130 = por %p128, %p129
      %p132 = scmp.ne.s32.totalorder %s115, %s131
      %p133 = scmp.eq.s32.totalorder %s26, 0
      %p134 = por %p132, %p133
      %s135 = ssub.s32 %s27, %s46
      %p136 = scmp.eq.s32.totalorder %s135, 0
      %s138 = sadd.s32 %s137, 1
      %s139 = scalar_select %p136, %s137, %s138
      %p142 = pneg %p136
      %p143 = scmp.eq.s32.totalorder %s20, 3
      %p144 = por %p142, %p143
      %p145 = scmp.ne.s32.totalorder %s137, %s140
      %p146 = scmp.eq.s32.totalorder %s20, 0
      %p147 = por %p145, %p146
      %p148 = scmp.ne.s32.totalorder %s137, %s140
      %p149 = scmp.eq.s32.totalorder %s25, 3
      %p150 = por %p148, %p149
      %p151 = scmp.ne.s32.totalorder %s140, %s141
      %p152 = scmp.eq.s32.totalorder %s25, 0
      %p153 = por %p151, %p152
      %p154 = scmp.ne.s32.totalorder %s140, %s141
      %p155 = scmp.eq.s32.totalorder %s26, 3
      %p156 = por %p154, %p155
      %p158 = scmp.ne.s32.totalorder %s141, %s157
      %p159 = scmp.eq.s32.totalorder %s26, 0
      %p160 = por %p158, %p159
      %p161 = scmp.le.s32.totalorder 1, %s20
      %p162 = scmp.lt.s32.totalorder %s20, 5
      %p163 = pnand %p161, %p162
      %p164 = pneg %p163
      // Predicated region
      $region9: #{tpu_custom_call.1} parent=5 // pred_check
        _
      $region10: #{tpu_custom_call.1} parent=5 // pred_check_branch
        %166 = sbr.rel (%p163) target = $region12
      $region11: #{tpu_custom_call.1} parent=5 // pred_region
        %s167 = ssub.s32 %s20, 1
        // Predicated region
        $region13: #{tpu_custom_call.1} parent=11 // pred_check
          %p168 = pneg %p97
        $region14: #{tpu_custom_call.1} parent=11 // pred_check_branch
          %170 = sbr.rel (%p168) target = $region16
        $region15: #{tpu_custom_call.1} parent=11 // pred_region
          %s171 = smul.u32 16, %s32
          %s173 = ssub.s32 1024, 1024
          %174 = vsyncadd [#allocation7], %s173
          %s175 = smul.addr %s171, 64
          %s176 = scalar_lea.hbm %s1, %s175
          %s177 = sshll.u32 [#allocation6], 4
          %s178 = int_to_ptr.vmem [resolvable:$true] %s177
          %183 = dma.hbm_to_vmem [thread:$0]  %s176, 1024, %s178, [#allocation7], 64, 64, 4
        $region16: #{tpu_custom_call.1} parent=11 // pred_fallthru
          _
      $region12: #{tpu_custom_call.1} parent=5 // pred_fallthru
        _
      %p184 = scmp.lt.s32.totalorder %s20, 4
      // Predicated region
      $region17: #{tpu_custom_call.1} parent=5 // pred_check
        %p185 = pneg %p184
      $region18: #{tpu_custom_call.1} parent=5 // pred_check_branch
        %187 = sbr.rel (%p185) target = $region20
      $region19: #{tpu_custom_call.1} parent=5 // pred_region
        // Predicated region
        $region21: #{tpu_custom_call.1} parent=19 // pred_check
          %p188 = pneg %p65
        $region22: #{tpu_custom_call.1} parent=19 // pred_check_branch
          %190 = sbr.rel (%p188) target = $region24
        $region23: #{tpu_custom_call.1} parent=19 // pred_region
          %s191 = sand.u32 %s55, 1
          %s192 = scalar_lea.sflag [#allocation4], %s191
          %s193 = sand.u32 %s55, 1
          %s194 = smul.addr %s193, 64
          %s195 = scalar_lea.vmem [#allocation3], %s194
          %s196 = smul.u32 %s27, 2
          %s197 = sadd.s32 %s196, %s28
          %s198 = smul.u32 16, %s197
          %s200 = ssub.s32 1024, 1024
          %201 = vsyncadd %s192, %s200
          %s202 = sadd.s32 %s29, %s198
          %s203 = smul.addr %s202, 64
          %s204 = scalar_lea.hbm %s0, %s203
          %s205 = sshll.u32 %s195, 4
          %s206 = int_to_ptr.vmem [resolvable:$true] %s205
          %211 = dma.hbm_to_vmem [thread:$0]  %s204, 1024, %s206, %s192, 64, 64, 4
        $region24: #{tpu_custom_call.1} parent=19 // pred_fallthru
          _
      $region20: #{tpu_custom_call.1} parent=5 // pred_fallthru
        _
      %p212 = scmp.le.s32.totalorder 1, %s20
      %p213 = scmp.lt.s32.totalorder %s20, 5
      %p214 = pnand %p212, %p213
      %p215 = pneg %p214
      // Predicated region
      $region25: #{tpu_custom_call.1} parent=5 // pred_check
        _
      $region26: #{tpu_custom_call.1} parent=5 // pred_check_branch
        %217 = sbr.rel (%p214) target = $region28
      $region27: #{tpu_custom_call.1} parent=5 // pred_region
        %s218 = ssub.s32 %s20, 1
        %s219 = sand.u32 %s58, 1
        %s220 = scalar_lea.sflag [#allocation4], %s219
        %s221 = sand.u32 %s58, 1
        %s222 = smul.addr %s221, 64
        %s223 = scalar_lea.vmem [#allocation3], %s222
        // Predicated region
        $region29: #{tpu_custom_call.1} parent=27 // pred_check
          %p224 = pneg %p71
        $region30: #{tpu_custom_call.1} parent=27 // pred_check_branch
          %226 = sbr.rel (%p224) target = $region32
        $region31: #{tpu_custom_call.1} parent=27 // pred_region
          %227 = dma.done %s220, 1024
        $region32: #{tpu_custom_call.1} parent=27 // pred_fallthru
          _
        // Predicated region
        $region33: #{tpu_custom_call.1} parent=27 // pred_check
          %p228 = pneg %p97
        $region34: #{tpu_custom_call.1} parent=27 // pred_check_branch
          %230 = sbr.rel (%p228) target = $region36
        $region35: #{tpu_custom_call.1} parent=27 // pred_region
          %231 = dma.done [#allocation7], 1024
        $region36: #{tpu_custom_call.1} parent=27 // pred_fallthru
          _
        %s232 = sand.u32 %s58, 1
        %s233 = scalar_lea.sflag [#allocation4], %s232
        %s234 = sand.u32 %s58, 1
        %s235 = smul.addr %s234, 64
        %s236 = scalar_lea.vmem [#allocation3], %s235
        %p237 = pneg %p71
        %p238 = pneg %p68
        %p239 = pneg %p97
        %p240 = pneg %p94
        %p241 = pneg %p127
        %p242 = pneg %p124
        %s243 = sand.u32 %s114, 1
        %s244 = scalar_lea.sflag [#allocation5], %s243
        %s245 = sand.u32 %s114, 1
        %s246 = smul.addr %s245, 64
        %s247 = scalar_lea.vmem [#allocation8], %s246
        %p248 = pneg %p153
        %p249 = pneg %p150
        %s250 = sand.u32 %s140, 1
        %s251 = scalar_lea.sflag [#allocation10], %s250
        %s252 = sand.u32 %s140, 1
        %s253 = smul.addr %s252, 8
        %s254 = scalar_lea.vmem [#allocation9], %s253
        %s255 = smul.u32 %s30, 2
        %s256 = sadd.s32 %s255, %s31
        %s257 = smul.u32 16, %s256
        %s258 = smul.u32 16, %s32
        %s259 = smul.u32 %s30, 2
        %s260 = sadd.s32 %s259, %s31
        %s261 = smul.u32 16, %s260
        %p263 = scmp.eq.s32.totalorder %s31, 0
        %p264 = scmp.eq.s32.totalorder %s32, 0
        %p265 = pnand %p263, %p264
        %p266 = pneg %p265
        // Predicated region
        $region37: #{tpu_custom_call.1} parent=27 // pred_check
          _
        $region38: #{tpu_custom_call.1} parent=27 // pred_check_branch
          %268 = sbr.rel (%p265) target = $region40
        $region39: #{tpu_custom_call.1} parent=27 // pred_region
          %269 = vst [vmem:[%s254] sm:$0xff] 0.0
        $region40: #{tpu_custom_call.1} parent=27 // pred_fallthru
          _
        // Predicated region
        $region41: #{tpu_custom_call.1} parent=27 // pred_check
          %p270 = pneg %p264
        $region42: #{tpu_custom_call.1} parent=27 // pred_check_branch
          %272 = sbr.rel (%p270) target = $region44
        $region43: #{tpu_custom_call.1} parent=27 // pred_region
          %273 = vst [vmem:[#allocation2] sm:$0xff] 0.0
          %274 = vst [vmem:[#allocation2 + $0x8] sm:$0xff] 0.0
          %275 = vst [vmem:[#allocation2 + $0x10] sm:$0xff] 0.0
          %276 = vst [vmem:[#allocation2 + $0x18] sm:$0xff] 0.0
          %277 = vst [vmem:[#allocation2 + $0x20] sm:$0xff] 0.0
          %278 = vst [vmem:[#allocation2 + $0x28] sm:$0xff] 0.0
          %279 = vst [vmem:[#allocation2 + $0x30] sm:$0xff] 0.0
          %280 = vst [vmem:[#allocation2 + $0x38] sm:$0xff] 0.0
          %281 = vst [vmem:[#allocation2 + $0x40] sm:$0xff] 0.0
          %282 = vst [vmem:[#allocation2 + $0x48] sm:$0xff] 0.0
          %283 = vst [vmem:[#allocation2 + $0x50] sm:$0xff] 0.0
          %284 = vst [vmem:[#allocation2 + $0x58] sm:$0xff] 0.0
          %285 = vst [vmem:[#allocation2 + $0x60] sm:$0xff] 0.0
          %286 = vst [vmem:[#allocation2 + $0x68] sm:$0xff] 0.0
          %287 = vst [vmem:[#allocation2 + $0x70] sm:$0xff] 0.0
          %288 = vst [vmem:[#allocation2 + $0x78] sm:$0xff] 0.0
        $region44: #{tpu_custom_call.1} parent=27 // pred_fallthru
          _
        %v289 = vld [vmem:[#allocation2] sm:$0xff]
        %v290 = vld [vmem:[#allocation2 + $0x8] sm:$0xff]
        %v291 = vld [vmem:[#allocation2 + $0x10] sm:$0xff]
        %v292 = vld [vmem:[#allocation2 + $0x18] sm:$0xff]
        %v293 = vld [vmem:[#allocation2 + $0x20] sm:$0xff]
        %v294 = vld [vmem:[#allocation2 + $0x28] sm:$0xff]
        %v295 = vld [vmem:[#allocation2 + $0x30] sm:$0xff]
        %v296 = vld [vmem:[#allocation2 + $0x38] sm:$0xff]
        %v297 = vld [vmem:[#allocation2 + $0x40] sm:$0xff]
        %v298 = vld [vmem:[#allocation2 + $0x48] sm:$0xff]
        %v299 = vld [vmem:[#allocation2 + $0x50] sm:$0xff]
        %v300 = vld [vmem:[#allocation2 + $0x58] sm:$0xff]
        %v301 = vld [vmem:[#allocation2 + $0x60] sm:$0xff]
        %v302 = vld [vmem:[#allocation2 + $0x68] sm:$0xff]
        %v303 = vld [vmem:[#allocation2 + $0x70] sm:$0xff]
        %v304 = vld [vmem:[#allocation2 + $0x78] sm:$0xff]
        %v305 = vld [vmem:[%s223] sm:$0xf]
        %v306 = vld [vmem:[%s223 + $0x4] sm:$0xf]
        %v307 = vld [vmem:[%s223 + $0x8] sm:$0xf]
        %v308 = vld [vmem:[%s223 + $0xc] sm:$0xf]
        %v309 = vld [vmem:[%s223 + $0x10] sm:$0xf]
        %v310 = vld [vmem:[%s223 + $0x14] sm:$0xf]
        %v311 = vld [vmem:[%s223 + $0x18] sm:$0xf]
        %v312 = vld [vmem:[%s223 + $0x1c] sm:$0xf]
        %v313 = vld [vmem:[%s223 + $0x20] sm:$0xf]
        %v314 = vld [vmem:[%s223 + $0x24] sm:$0xf]
        %v315 = vld [vmem:[%s223 + $0x28] sm:$0xf]
        %v316 = vld [vmem:[%s223 + $0x2c] sm:$0xf]
        %v317 = vld [vmem:[%s223 + $0x30] sm:$0xf]
        %v318 = vld [vmem:[%s223 + $0x34] sm:$0xf]
        %v319 = vld [vmem:[%s223 + $0x38] sm:$0xf]
        %v320 = vld [vmem:[%s223 + $0x3c] sm:$0xf]
        %v321 = vld [vmem:[#allocation6] sm:$0xf]
        %v322 = vld [vmem:[#allocation6 + $0x4] sm:$0xf]
        %v323 = vld [vmem:[#allocation6 + $0x8] sm:$0xf]
        %v324 = vld [vmem:[#allocation6 + $0xc] sm:$0xf]
        %v325 = vld [vmem:[#allocation6 + $0x10] sm:$0xf]
        %v326 = vld [vmem:[#allocation6 + $0x14] sm:$0xf]
        %v327 = vld [vmem:[#allocation6 + $0x18] sm:$0xf]
        %v328 = vld [vmem:[#allocation6 + $0x1c] sm:$0xf]
        %v329 = vld [vmem:[#allocation6 + $0x20] sm:$0xf]
        %v330 = vld [vmem:[#allocation6 + $0x24] sm:$0xf]
        %v331 = vld [vmem:[#allocation6 + $0x28] sm:$0xf]
        %v332 = vld [vmem:[#allocation6 + $0x2c] sm:$0xf]
        %v333 = vld [vmem:[#allocation6 + $0x30] sm:$0xf]
        %v334 = vld [vmem:[#allocation6 + $0x34] sm:$0xf]
        %v335 = vld [vmem:[#allocation6 + $0x38] sm:$0xf]
        %v336 = vld [vmem:[#allocation6 + $0x3c] sm:$0xf]
        %v353 = vunpack.c.l.b16 %v305
        %v354 = vunpack.c.l.b16 %v306
        %v355 = vunpack.c.l.b16 %v307
        %v356 = vunpack.c.l.b16 %v308
        %v357 = vunpack.c.l.b16 %v309
        %v358 = vunpack.c.l.b16 %v310
        %v359 = vunpack.c.l.b16 %v311
        %v360 = vunpack.c.l.b16 %v312
        %v361 = vunpack.c.l.b16 %v313
        %v362 = vunpack.c.l.b16 %v314
        %v363 = vunpack.c.l.b16 %v315
        %v364 = vunpack.c.l.b16 %v316
        %v365 = vunpack.c.l.b16 %v317
        %v366 = vunpack.c.l.b16 %v318
        %v367 = vunpack.c.l.b16 %v319
        %v368 = vunpack.c.l.b16 %v320
        %v369 = vpack.c.b16 %v354, %v353
        %v370 = vpack.c.b16 %v356, %v355
        %v371 = vpack.c.b16 %v358, %v357
        %v372 = vpack.c.b16 %v360, %v359
        %v373 = vpack.c.b16 %v362, %v361
        %v374 = vpack.c.b16 %v364, %v363
        %v375 = vpack.c.b16 %v366, %v365
        %v376 = vpack.c.b16 %v368, %v367
        %v401 = vunpack.c.l.b16 %v321
        %v402 = vunpack.c.l.b16 %v322
        %v403 = vunpack.c.l.b16 %v323
        %v404 = vunpack.c.l.b16 %v324
        %v405 = vunpack.c.l.b16 %v325
        %v406 = vunpack.c.l.b16 %v326
        %v407 = vunpack.c.l.b16 %v327
        %v408 = vunpack.c.l.b16 %v328
        %v409 = vunpack.c.l.b16 %v329
        %v410 = vunpack.c.l.b16 %v330
        %v411 = vunpack.c.l.b16 %v331
        %v412 = vunpack.c.l.b16 %v332
        %v413 = vunpack.c.l.b16 %v333
        %v414 = vunpack.c.l.b16 %v334
        %v415 = vunpack.c.l.b16 %v335
        %v416 = vunpack.c.l.b16 %v336
        %v417 = vpack.c.b16 %v402, %v401
        %v418 = vpack.c.b16 %v404, %v403
        %v419 = vpack.c.b16 %v406, %v405
        %v420 = vpack.c.b16 %v408, %v407
        %v421 = vpack.c.b16 %v410, %v409
        %v422 = vpack.c.b16 %v412, %v411
        %v423 = vpack.c.b16 %v414, %v413
        %v424 = vpack.c.b16 %v416, %v415
        %433 = vmatprep.subr.bf16.mxu0 0
        %434 = vmatpush1.bf16.msra.mxu0 %v424
        %435 = vmatprep.subr.bf16.mxu0 0
        %436 = vmatpush1.bf16.msra.mxu0 %v423
        %437 = vmatprep.subr.bf16.mxu0 0
        %438 = vmatpush1.bf16.msra.mxu0 %v422
        %439 = vmatprep.subr.bf16.mxu0 0
        %440 = vmatpush1.bf16.msra.mxu0 %v421
        %441 = vmatprep.subr.bf16.mxu0 0
        %442 = vmatpush1.bf16.msra.mxu0 %v420
        %443 = vmatprep.subr.bf16.mxu0 0
        %444 = vmatpush1.bf16.msra.mxu0 %v419
        %445 = vmatprep.subr.bf16.mxu0 0
        %446 = vmatpush1.bf16.msra.mxu0 %v418
        %447 = vmatprep.subr.bf16.mxu0 0
        %448 = vmatpush1.bf16.msra.mxu0 %v417
        %449 = vmatprep.subr.bf16.mxu0 0
        %450 = vmatpush2.bf16.msra.mxu0 0
        %451 = vmatprep.subr.bf16.mxu0 0
        %452 = vmatpush2.bf16.msra.mxu0 0
        %453 = vmatprep.subr.bf16.mxu0 0
        %454 = vmatpush2.bf16.msra.mxu0 0
        %455 = vmatprep.subr.bf16.mxu0 0
        %456 = vmatpush2.bf16.msra.mxu0 0
        %457 = vmatprep.subr.bf16.mxu0 0
        %458 = vmatpush2.bf16.msra.mxu0 0
        %459 = vmatprep.subr.bf16.mxu0 0
        %460 = vmatpush2.bf16.msra.mxu0 0
        %461 = vmatprep.subr.bf16.mxu0 0
        %462 = vmatpush2.bf16.msra.mxu0 0
        %463 = vmatprep.subr.bf16.mxu0 0
        %464 = vmatpush2.bf16.msra.mxu0 0
        %465 = vmatprep.mubr.bf16.mxu0 0
        %466 = vmatmul.mubr.bf16.gmra.mxu0 %v369
        %v467 = vpop.f32.mrf.mxu0
        %v468 = vadd.f32 0.0, %v467
        %v469 = vpop.f32.mrf.mxu0
        %v470 = vpop.f32.mrf.mxu0
        %v471 = vadd.f32 0.0, %v470
        %v472 = vpop.f32.mrf.mxu0
        %473 = vmatprep.mubr.bf16.mxu0 0
        %474 = vmatmul.mubr.bf16.gmra.mxu0 %v370
        %v475 = vpop.f32.mrf.mxu0
        %v476 = vadd.f32 0.0, %v475
        %v477 = vpop.f32.mrf.mxu0
        %v478 = vpop.f32.mrf.mxu0
        %v479 = vadd.f32 0.0, %v478
        %v480 = vpop.f32.mrf.mxu0
        %481 = vmatprep.mubr.bf16.mxu0 0
        %482 = vmatmul.mubr.bf16.gmra.mxu0 %v371
        %v483 = vpop.f32.mrf.mxu0
        %v484 = vadd.f32 0.0, %v483
        %v485 = vpop.f32.mrf.mxu0
        %v486 = vpop.f32.mrf.mxu0
        %v487 = vadd.f32 0.0, %v486
        %v488 = vpop.f32.mrf.mxu0
        %489 = vmatprep.mubr.bf16.mxu0 0
        %490 = vmatmul.mubr.bf16.gmra.mxu0 %v372
        %v491 = vpop.f32.mrf.mxu0
        %v492 = vadd.f32 0.0, %v491
        %v493 = vpop.f32.mrf.mxu0
        %v494 = vpop.f32.mrf.mxu0
        %v495 = vadd.f32 0.0, %v494
        %v496 = vpop.f32.mrf.mxu0
        %497 = vmatprep.mubr.bf16.mxu0 0
        %498 = vmatmul.mubr.bf16.gmra.mxu0 %v373
        %v499 = vpop.f32.mrf.mxu0
        %v500 = vadd.f32 0.0, %v499
        %v501 = vpop.f32.mrf.mxu0
        %v502 = vpop.f32.mrf.mxu0
        %v503 = vadd.f32 0.0, %v502
        %v504 = vpop.f32.mrf.mxu0
        %505 = vmatprep.mubr.bf16.mxu0 0
        %506 = vmatmul.mubr.bf16.gmra.mxu0 %v374
        %v507 = vpop.f32.mrf.mxu0
        %v508 = vadd.f32 0.0, %v507
        %v509 = vpop.f32.mrf.mxu0
        %v510 = vpop.f32.mrf.mxu0
        %v511 = vadd.f32 0.0, %v510
        %v512 = vpop.f32.mrf.mxu0
        %513 = vmatprep.mubr.bf16.mxu0 0
        %514 = vmatmul.mubr.bf16.gmra.mxu0 %v375
        %v515 = vpop.f32.mrf.mxu0
        %v516 = vadd.f32 0.0, %v515
        %v517 = vpop.f32.mrf.mxu0
        %v518 = vpop.f32.mrf.mxu0
        %v519 = vadd.f32 0.0, %v518
        %v520 = vpop.f32.mrf.mxu0
        %521 = vmatprep.mubr.bf16.mxu0 0
        %522 = vmatmul.mubr.bf16.gmra.mxu0 %v376
        %v523 = vpop.f32.mrf.mxu0
        %v524 = vadd.f32 0.0, %v523
        %v525 = vpop.f32.mrf.mxu0
        %v526 = vpop.f32.mrf.mxu0
        %v527 = vadd.f32 0.0, %v526
        %v528 = vpop.f32.mrf.mxu0
        %529 = vdwg.mxu0
        %v530 = vadd.f32 %v289, %v468
        %v531 = vadd.f32 %v290, %v471
        %v532 = vadd.f32 %v291, %v476
        %v533 = vadd.f32 %v292, %v479
        %v534 = vadd.f32 %v293, %v484
        %v535 = vadd.f32 %v294, %v487
        %v536 = vadd.f32 %v295, %v492
        %v537 = vadd.f32 %v296, %v495
        %v538 = vadd.f32 %v297, %v500
        %v539 = vadd.f32 %v298, %v503
        %v540 = vadd.f32 %v299, %v508
        %v541 = vadd.f32 %v300, %v511
        %v542 = vadd.f32 %v301, %v516
        %v543 = vadd.f32 %v302, %v519
        %v544 = vadd.f32 %v303, %v524
        %v545 = vadd.f32 %v304, %v527
        %546 = vst [vmem:[#allocation2] sm:$0xff] %v530
        %547 = vst [vmem:[#allocation2 + $0x8] sm:$0xff] %v531
        %548 = vst [vmem:[#allocation2 + $0x10] sm:$0xff] %v532
        %549 = vst [vmem:[#allocation2 + $0x18] sm:$0xff] %v533
        %550 = vst [vmem:[#allocation2 + $0x20] sm:$0xff] %v534
        %551 = vst [vmem:[#allocation2 + $0x28] sm:$0xff] %v535
        %552 = vst [vmem:[#allocation2 + $0x30] sm:$0xff] %v536
        %553 = vst [vmem:[#allocation2 + $0x38] sm:$0xff] %v537
        %554 = vst [vmem:[#allocation2 + $0x40] sm:$0xff] %v538
        %555 = vst [vmem:[#allocation2 + $0x48] sm:$0xff] %v539
        %556 = vst [vmem:[#allocation2 + $0x50] sm:$0xff] %v540
        %557 = vst [vmem:[#allocation2 + $0x58] sm:$0xff] %v541
        %558 = vst [vmem:[#allocation2 + $0x60] sm:$0xff] %v542
        %559 = vst [vmem:[#allocation2 + $0x68] sm:$0xff] %v543
        %560 = vst [vmem:[#allocation2 + $0x70] sm:$0xff] %v544
        %561 = vst [vmem:[#allocation2 + $0x78] sm:$0xff] %v545
        // Predicated region
        $region45: #{tpu_custom_call.1} parent=27 // pred_check
          %p562 = pneg %p264
        $region46: #{tpu_custom_call.1} parent=27 // pred_check_branch
          %564 = sbr.rel (%p562) target = $region48
        $region47: #{tpu_custom_call.1} parent=27 // pred_region
          %v565 = vld [vmem:[#allocation2] sm:$0xff]
          %v566 = vld [vmem:[#allocation2 + $0x8] sm:$0xff]
          %v567 = vld [vmem:[#allocation2 + $0x10] sm:$0xff]
          %v568 = vld [vmem:[#allocation2 + $0x18] sm:$0xff]
          %v569 = vld [vmem:[#allocation2 + $0x20] sm:$0xff]
          %v570 = vld [vmem:[#allocation2 + $0x28] sm:$0xff]
          %v571 = vld [vmem:[#allocation2 + $0x30] sm:$0xff]
          %v572 = vld [vmem:[#allocation2 + $0x38] sm:$0xff]
          %v573 = vld [vmem:[#allocation2 + $0x40] sm:$0xff]
          %v574 = vld [vmem:[#allocation2 + $0x48] sm:$0xff]
          %v575 = vld [vmem:[#allocation2 + $0x50] sm:$0xff]
          %v576 = vld [vmem:[#allocation2 + $0x58] sm:$0xff]
          %v577 = vld [vmem:[#allocation2 + $0x60] sm:$0xff]
          %v578 = vld [vmem:[#allocation2 + $0x68] sm:$0xff]
          %v579 = vld [vmem:[#allocation2 + $0x70] sm:$0xff]
          %v580 = vld [vmem:[#allocation2 + $0x78] sm:$0xff]
          %v581 = vpack.c.bf16 %v566, %v565
          %v582 = vpack.c.bf16 %v568, %v567
          %v583 = vpack.c.bf16 %v570, %v569
          %v584 = vpack.c.bf16 %v572, %v571
          %v585 = vpack.c.bf16 %v574, %v573
          %v586 = vpack.c.bf16 %v576, %v575
          %v587 = vpack.c.bf16 %v578, %v577
          %v588 = vpack.c.bf16 %v580, %v579
          %v597 = vunpack.c.l.b16 %v581
          %v598 = vunpack.c.h.b16 %v581
          %v599 = vunpack.c.l.b16 %v582
          %v600 = vunpack.c.h.b16 %v582
          %v601 = vunpack.c.l.b16 %v583
          %v602 = vunpack.c.h.b16 %v583
          %v603 = vunpack.c.l.b16 %v584
          %v604 = vunpack.c.h.b16 %v584
          %v605 = vunpack.c.l.b16 %v585
          %v606 = vunpack.c.h.b16 %v585
          %v607 = vunpack.c.l.b16 %v586
          %v608 = vunpack.c.h.b16 %v586
          %v609 = vunpack.c.l.b16 %v587
          %v610 = vunpack.c.h.b16 %v587
          %v611 = vunpack.c.l.b16 %v588
          %v612 = vunpack.c.h.b16 %v588
          %v613 = vpack.c.b16 %v597, %v597
          %v614 = vpack.c.b16 %v598, %v598
          %v615 = vpack.c.b16 %v599, %v599
          %v616 = vpack.c.b16 %v600, %v600
          %v617 = vpack.c.b16 %v601, %v601
          %v618 = vpack.c.b16 %v602, %v602
          %v619 = vpack.c.b16 %v603, %v603
          %v620 = vpack.c.b16 %v604, %v604
          %v621 = vpack.c.b16 %v605, %v605
          %v622 = vpack.c.b16 %v606, %v606
          %v623 = vpack.c.b16 %v607, %v607
          %v624 = vpack.c.b16 %v608, %v608
          %v625 = vpack.c.b16 %v609, %v609
          %v626 = vpack.c.b16 %v610, %v610
          %v627 = vpack.c.b16 %v611, %v611
          %v628 = vpack.c.b16 %v612, %v612
          %645 = vst [vmem:[%s247] sm:$0xf] %v613
          %646 = vst [vmem:[%s247 + $0x4] sm:$0xf] %v614
          %647 = vst [vmem:[%s247 + $0x8] sm:$0xf] %v615
          %648 = vst [vmem:[%s247 + $0xc] sm:$0xf] %v616
          %649 = vst [vmem:[%s247 + $0x10] sm:$0xf] %v617
          %650 = vst [vmem:[%s247 + $0x14] sm:$0xf] %v618
          %651 = vst [vmem:[%s247 + $0x18] sm:$0xf] %v619
          %652 = vst [vmem:[%s247 + $0x1c] sm:$0xf] %v620
          %653 = vst [vmem:[%s247 + $0x20] sm:$0xf] %v621
          %654 = vst [vmem:[%s247 + $0x24] sm:$0xf] %v622
          %655 = vst [vmem:[%s247 + $0x28] sm:$0xf] %v623
          %656 = vst [vmem:[%s247 + $0x2c] sm:$0xf] %v624
          %657 = vst [vmem:[%s247 + $0x30] sm:$0xf] %v625
          %658 = vst [vmem:[%s247 + $0x34] sm:$0xf] %v626
          %659 = vst [vmem:[%s247 + $0x38] sm:$0xf] %v627
          %660 = vst [vmem:[%s247 + $0x3c] sm:$0xf] %v628
          %v661 = vadd.f32 %v565, %v566
          %v662 = vadd.f32 %v661, %v567
          %v663 = vadd.f32 %v662, %v568
          %v664 = vadd.f32 %v663, %v569
          %v665 = vadd.f32 %v664, %v570
          %v666 = vadd.f32 %v665, %v571
          %v667 = vadd.f32 %v666, %v572
          %v668 = vadd.f32 %v667, %v573
          %v669 = vadd.f32 %v668, %v574
          %v670 = vadd.f32 %v669, %v575
          %v671 = vadd.f32 %v670, %v576
          %v672 = vadd.f32 %v671, %v577
          %v673 = vadd.f32 %v672, %v578
          %v674 = vadd.f32 %v673, %v579
          %v675 = vadd.f32 %v674, %v580
          %v676 = vrot.slane %v675, 4
          %v677 = vadd.f32 %v675, %v676
          %v678 = vrot.slane %v677, 2
          %v679 = vadd.f32 %v677, %v678
          %v680 = vrot.slane %v679, 1
          %v681 = vadd.f32 %v679, %v680
          %v682 = vmul.f32 %v565, %v565
          %v683 = vmul.f32 %v566, %v566
          %v684 = vmul.f32 %v567, %v567
          %v685 = vmul.f32 %v568, %v568
          %v686 = vmul.f32 %v569, %v569
          %v687 = vmul.f32 %v570, %v570
          %v688 = vmul.f32 %v571, %v571
          %v689 = vmul.f32 %v572, %v572
          %v690 = vmul.f32 %v573, %v573
          %v691 = vmul.f32 %v574, %v574
          %v692 = vmul.f32 %v575, %v575
          %v693 = vmul.f32 %v576, %v576
          %v694 = vmul.f32 %v577, %v577
          %v695 = vmul.f32 %v578, %v578
          %v696 = vmul.f32 %v579, %v579
          %v697 = vmul.f32 %v580, %v580
          %v698 = vadd.f32 %v682, %v683
          %v699 = vadd.f32 %v698, %v684
          %v700 = vadd.f32 %v699, %v685
          %v701 = vadd.f32 %v700, %v686
          %v702 = vadd.f32 %v701, %v687
          %v703 = vadd.f32 %v702, %v688
          %v704 = vadd.f32 %v703, %v689
          %v705 = vadd.f32 %v704, %v690
          %v706 = vadd.f32 %v705, %v691
          %v707 = vadd.f32 %v706, %v692
          %v708 = vadd.f32 %v707, %v693
          %v709 = vadd.f32 %v708, %v694
          %v710 = vadd.f32 %v709, %v695
          %v711 = vadd.f32 %v710, %v696
          %v712 = vadd.f32 %v711, %v697
          %v713 = vrot.slane %v712, 4
          %v714 = vadd.f32 %v712, %v713
          %v715 = vrot.slane %v714, 2
          %v716 = vadd.f32 %v714, %v715
          %v717 = vrot.slane %v716, 1
          %v718 = vadd.f32 %v716, %v717
          %vm719 = vcmask 1040384
          %v720 = vsel %vm719, %v681, %v718
          %v721 = vld [vmem:[%s254] sm:$0x3]
          %v722 = vadd.f32 %v721, %v720
          %723 = vst [vmem:[%s254] sm:$0x3] %v722
        $region48: #{tpu_custom_call.1} parent=27 // pred_fallthru
          _
        %s724 = sand.u32 %s114, 1
        %s725 = scalar_lea.sflag [#allocation5], %s724
        %s726 = sand.u32 %s114, 1
        %s727 = smul.addr %s726, 64
        %s728 = scalar_lea.vmem [#allocation8], %s727
        %s729 = sand.u32 %s140, 1
        %s730 = scalar_lea.sflag [#allocation10], %s729
        %s731 = sand.u32 %s140, 1
        %s732 = smul.addr %s731, 8
        %s733 = scalar_lea.vmem [#allocation9], %s732
        // Predicated region
        $region49: #{tpu_custom_call.1} parent=27 // pred_check
          %p734 = pneg %p124
        $region50: #{tpu_custom_call.1} parent=27 // pred_check_branch
          %736 = sbr.rel (%p734) target = $region52
        $region51: #{tpu_custom_call.1} parent=27 // pred_region
          %s737 = smul.u32 %s30, 2
          %s738 = sadd.s32 %s737, %s31
          %s739 = smul.u32 16, %s738
          %s741 = ssub.s32 1024, 1024
          %742 = vsyncadd %s725, %s741
          %s743 = smul.addr %s739, 64
          %s744 = scalar_lea.hbm %s2, %s743
          %s745 = sshll.u32 %s728, 4
          %s746 = int_to_ptr.vmem [resolvable:$true] %s745
          %751 = dma.vmem_to_hbm [thread:$0]  %s746, 1024, %s744, %s725, 64, 64, 4
        $region52: #{tpu_custom_call.1} parent=27 // pred_fallthru
          _
        // Predicated region
        $region53: #{tpu_custom_call.1} parent=27 // pred_check
          %p752 = pneg %p150
        $region54: #{tpu_custom_call.1} parent=27 // pred_check_branch
          %754 = sbr.rel (%p752) target = $region56
        $region55: #{tpu_custom_call.1} parent=27 // pred_region
          %s756 = ssub.s32 128, 128
          %757 = vsyncadd %s730, %s756
          %s758 = smul.addr %s30, 128
          %s759 = scalar_lea.hbm %s3, %s758
          %s761 = sshll.u32 %s733, 4
          %s762 = int_to_ptr.vmem [resolvable:$true] %s761
          %764 = dma.vmem_to_hbm [thread:$0]  %s762, 128, %s759, %s730
        $region56: #{tpu_custom_call.1} parent=27 // pred_fallthru
          _
      $region28: #{tpu_custom_call.1} parent=5 // pred_fallthru
        _
      %p765 = scmp.le.s32.totalorder 2, %s20
      // Predicated region
      $region57: #{tpu_custom_call.1} parent=5 // pred_check
        %p766 = pneg %p765
      $region58: #{tpu_custom_call.1} parent=5 // pred_check_branch
        %768 = sbr.rel (%p766) target = $region60
      $region59: #{tpu_custom_call.1} parent=5 // pred_region
        %s769 = ssub.s32 %s20, 2
        // Predicated region
        $region61: #{tpu_custom_call.1} parent=59 // pred_check
          %p770 = pneg %p130
        $region62: #{tpu_custom_call.1} parent=59 // pred_check_branch
          %772 = sbr.rel (%p770) target = $region64
        $region63: #{tpu_custom_call.1} parent=59 // pred_region
          %s773 = sand.u32 %s115, 1
          %s774 = scalar_lea.sflag [#allocation5], %s773
          %s775 = sand.u32 %s115, 1
          %s776 = smul.addr %s775, 64
          %s777 = scalar_lea.vmem [#allocation8], %s776
          %778 = dma.done %s774, 1024
        $region64: #{tpu_custom_call.1} parent=59 // pred_fallthru
          _
        // Predicated region
        $region65: #{tpu_custom_call.1} parent=59 // pred_check
          %p779 = pneg %p156
        $region66: #{tpu_custom_call.1} parent=59 // pred_check_branch
          %781 = sbr.rel (%p779) target = $region68
        $region67: #{tpu_custom_call.1} parent=59 // pred_region
          %s782 = sand.u32 %s141, 1
          %s783 = scalar_lea.sflag [#allocation10], %s782
          %s784 = sand.u32 %s141, 1
          %s785 = smul.addr %s784, 8
          %s786 = scalar_lea.vmem [#allocation9], %s785
          %787 = dma.done %s783, 128
        $region68: #{tpu_custom_call.1} parent=59 // pred_fallthru
          _
      $region60: #{tpu_custom_call.1} parent=5 // pred_fallthru
        _
    $region6: #{tpu_custom_call.1} parent=1 // loop_footer
      %s24 = sadd.s32 1, %s20
    $region7: #{tpu_custom_call.1} parent=1 // loop_footer_branch
      %19 = sbr.rel target = $region3
    $region8: #{tpu_custom_call.1} parent=1 // loop_exit
      _
    %788 = vsyncpa [#allocation4], 1
    %s789 = scalar_lea.sflag [#allocation4], 1
    %790 = vsyncpa %s789, 1
    %791 = vsyncpa [#allocation7], 1
    %792 = vsyncpa [#allocation5], 1
    %s793 = scalar_lea.sflag [#allocation5], 1
    %794 = vsyncpa %s793, 1
    %795 = vsyncpa [#allocation10], 1
    %s796 = scalar_lea.sflag [#allocation10], 1
    %797 = vsyncpa %s796, 1

</llo_original>
